<compile_context>
chip_gen: v7x
topology: tpu7x:2x2x1
jax: 0.10.0
libtpu: 0.0.40
codegen_flags: <defaults>
</compile_context>

<pallas_src>
import functools

import jax
import jax.numpy as jnp
from jax.experimental import pallas as pl
from jax.experimental.pallas import tpu as pltpu


def _round_up(n, m):
    return ((n + m - 1) // m) * m


def _non_linear_kernel(x_ref, w_ref, o_ref, *, b_blk, W_pad, KH, KW, P_out_lane):
    """Processes `b_blk` batch samples per grid step.

    x_ref : (b_blk, C_in, P_in_lane)    zero-padded, lane-dense flat activation
    w_ref : (b_blk, C_out, KH*KW*C_in)  per-sample filter, reduction = (kh,kw,ci)
    o_ref : (b_blk, C_out, P_out_lane)  lane-dense flat output (padded-width rows)
    """
    for b in range(b_blk):                       # static unroll over the block
        x_flat = x_ref[b]                        # (C_in, P_in_lane)
        w_mat = w_ref[b]                         # (C_out, KKC)

        # im2col, transposed: RHS is (KKC, P) with the pixel axis on lanes, so
        # the MXU contracts it directly (no relayout) and the (C_out, P)
        # result already matches o_ref.  Tap extraction = static lane-offset
        # slices (XLU lane shifts -- free relative to the MXU/VPU here).
        taps = []
        for kh in range(KH):
            for kw in range(KW):
                s = kh * W_pad + kw
                taps.append(x_flat[:, s:s + P_out_lane])   # (C_in, P_out_lane)
        patches = jnp.concatenate(taps, axis=0)            # (KKC, P_out_lane)

        out = jax.lax.dot_general(
            w_mat, patches,
            dimension_numbers=(((1,), (0,)), ((), ())),
            preferred_element_type=jnp.float32,
            precision=jax.lax.Precision.HIGHEST)            # (C_out, P_out_lane)

        o_ref[b] = out.astype(o_ref.dtype)


def _default_batch_block(B):
    # v7x has 2 TensorCores per chip: keep >= 2 'parallel' grid steps so both
    # stay fed.  Single-TC chips (v5e / v6e): fold the whole batch into one
    # grid step to amortize per-step overhead and maximize DMA size.
    try:
        kind = jax.devices()[0].device_kind.lower()
    except Exception:
        kind = ""
    if "v7" in kind and B > 1:
        return pl.cdiv(B, 2)
    return B


def non_linear_pallas(x_nchw, w, *, b_blk=None):
    """x_nchw: (B, C_in, H, W); w: (B, C_out, C_in, KH, KW) per-sample filters."""
    B, C_in, H, W = x_nchw.shape
    Bw, C_out, C_in_w, KH, KW = w.shape
    assert Bw == B and C_in_w == C_in
    # NOTE: valid only for stride-1, dilation-1, VALID-padding convolution --
    # the "compute padded grid then crop" layout below assumes it.
    H_out, W_out = H - KH + 1, W - KW + 1
    assert H_out > 0 and W_out > 0
    H_pad, W_pad = H + KH - 1, W + KW - 1
    KKC = KH * KW * C_in

    # Lane-dense extents.
    P_out = H_out * W_pad                      # rows we actually need, flat
    P_out_lane = _round_up(P_out, 128)         # unmasked, lane-dense stores
    s_max = (KH - 1) * W_pad + (KW - 1)        # largest tap offset
    P_in_lane = _round_up(max(H_pad * W_pad, s_max + P_out_lane), 128)

    if b_blk is None:
        b_blk = _default_batch_block(B)
    b_blk = max(1, min(int(b_blk), B))
    B_pad = _round_up(B, b_blk)

    # Padding + layout hoisted out of the kernel (XLA fuses these):
    #   activation -> (B_pad, C_in, P_in_lane): zero bottom/right border, flat,
    #   lane-padded.
    x_pad = jnp.pad(x_nchw, ((0, B_pad - B), (0, 0), (0, KH - 1), (0, KW - 1)))
    x_flat = x_pad.reshape(B_pad, C_in, H_pad * W_pad)
    x_flat = jnp.pad(x_flat, ((0, 0), (0, 0), (0, P_in_lane - H_pad * W_pad)))
    #   filters -> (B_pad, C_out, KKC), reduction index ordered (kh, kw, ci)
    #   to match the in-kernel tap concatenation order.
    w_mat = jnp.transpose(w, (0, 1, 3, 4, 2)).reshape(B, C_out, KKC)
    w_mat = jnp.pad(w_mat, ((0, B_pad - B), (0, 0), (0, 0)))

    kernel = functools.partial(
        _non_linear_kernel, b_blk=b_blk, W_pad=W_pad, KH=KH, KW=KW,
        P_out_lane=P_out_lane)

    out_flat = pl.pallas_call(
        kernel,
        out_shape=jax.ShapeDtypeStruct((B_pad, C_out, P_out_lane), x_nchw.dtype),
        grid_spec=pltpu.PrefetchScalarGridSpec(
            num_scalar_prefetch=0,
            grid=(B_pad // b_blk,),
            in_specs=[
                pl.BlockSpec((b_blk, C_in, P_in_lane), lambda n: (n, 0, 0)),
                pl.BlockSpec((b_blk, C_out, KKC), lambda n: (n, 0, 0)),
            ],
            out_specs=pl.BlockSpec((b_blk, C_out, P_out_lane),
                                   lambda n: (n, 0, 0)),
        ),
        compiler_params=pltpu.CompilerParams(
            dimension_semantics=("parallel",)),
    )(x_flat, w_mat)

    # Crop: keep valid rows (flat padded-width layout) -> (H_out, W_pad),
    # then keep the first W_out columns.  Pure XLA-side slicing.
    out = out_flat[:B, :, :P_out].reshape(B, C_out, H_out, W_pad)
    return out[:, :, :, :W_out]


def non_linear_reference(x, w):
    """Pure-JAX reference matching the PyTorch Non_Linear module."""
    outs = []
    for i in range(w.shape[0]):
        dn = jax.lax.conv_dimension_numbers(
            x[i:i + 1].shape, w[i].shape, ('NCHW', 'OIHW', 'NCHW'))
        outs.append(jax.lax.conv_general_dilated(
            x[i:i + 1], w[i], (1, 1), 'VALID', dimension_numbers=dn))
    return jnp.concatenate(outs, axis=0)


if __name__ == "__main__":
    # Small shapes consistent with the module: per-sample 3x3 conv, 4 channels.
    B, C_in, C_out, H, W, K = 2, 4, 4, 16, 16, 3

    key = jax.random.PRNGKey(0)
    kx, kw = jax.random.split(key)

    x = jax.random.normal(kx, (B, C_in, H, W), jnp.float32)
    fan_in = C_in * K * K
    bound = 1.0 / (fan_in ** 0.5)
    w = jax.random.uniform(kw, (B, C_out, C_in, K, K), jnp.float32, -bound, bound)

    out = non_linear_pallas(x, w)
    out = jax.block_until_ready(out)

    ref = non_linear_reference(x, w)
    assert out.shape == (B, C_out, H - K + 1, W - K + 1)
    assert jnp.allclose(out, ref, atol=1e-3, rtol=1e-3), "mismatch vs reference"

    print("KERNEL_OK")
</pallas_src>

<mosaic_0001>
module attributes {stable_mosaic.version = 11 : i64} {
  func.func @_non_linear_kernel(%arg0: i32, %arg1: memref<2x4x384xf32, #tpu.memory_space<vmem>>, %arg2: memref<2x4x36xf32, #tpu.memory_space<vmem>>, %arg3: memref<2x4x256xf32, #tpu.memory_space<vmem>>) attributes {dimension_semantics = [#tpu.dimension_semantics<parallel>], iteration_bounds = array<i64: 1>, scalar_prefetch = 0 : i64, scratch_operands = 0 : i64, tpu.core_type = #tpu.core_type<tc>, window_params = [{transform_indices = @transform_0, window_bounds = array<i64: 2, 4, 384>}, {transform_indices = @transform_1, window_bounds = array<i64: 2, 4, 36>}, {transform_indices = @transform_2, window_bounds = array<i64: 2, 4, 256>}]} {
    %c0 = arith.constant 0 : index
    %c0_0 = arith.constant 0 : index
    %c0_1 = arith.constant 0 : index
    %0 = vector.load %arg1[%c0, %c0_0, %c0_1] : memref<2x4x384xf32, #tpu.memory_space<vmem>>, vector<1x4x384xf32>
    %1 = vector.shape_cast %0 : vector<1x4x384xf32> to vector<4x384xf32>
    %c0_2 = arith.constant 0 : index
    %c0_3 = arith.constant 0 : index
    %c0_4 = arith.constant 0 : index
    %2 = vector.load %arg2[%c0_2, %c0_3, %c0_4] : memref<2x4x36xf32, #tpu.memory_space<vmem>>, vector<1x4x36xf32>
    %3 = vector.shape_cast %2 : vector<1x4x36xf32> to vector<4x36xf32>
    %4 = vector.extract_strided_slice %1 {offsets = [0, 0], sizes = [4, 256], strides = [1, 1]} : vector<4x384xf32> to vector<4x256xf32>
    %5 = vector.extract_strided_slice %1 {offsets = [0, 1], sizes = [4, 256], strides = [1, 1]} : vector<4x384xf32> to vector<4x256xf32>
    %6 = vector.extract_strided_slice %1 {offsets = [0, 2], sizes = [4, 256], strides = [1, 1]} : vector<4x384xf32> to vector<4x256xf32>
    %7 = vector.extract_strided_slice %1 {offsets = [0, 18], sizes = [4, 256], strides = [1, 1]} : vector<4x384xf32> to vector<4x256xf32>
    %8 = vector.extract_strided_slice %1 {offsets = [0, 19], sizes = [4, 256], strides = [1, 1]} : vector<4x384xf32> to vector<4x256xf32>
    %9 = vector.extract_strided_slice %1 {offsets = [0, 20], sizes = [4, 256], strides = [1, 1]} : vector<4x384xf32> to vector<4x256xf32>
    %10 = vector.extract_strided_slice %1 {offsets = [0, 36], sizes = [4, 256], strides = [1, 1]} : vector<4x384xf32> to vector<4x256xf32>
    %11 = vector.extract_strided_slice %1 {offsets = [0, 37], sizes = [4, 256], strides = [1, 1]} : vector<4x384xf32> to vector<4x256xf32>
    %12 = vector.extract_strided_slice %1 {offsets = [0, 38], sizes = [4, 256], strides = [1, 1]} : vector<4x384xf32> to vector<4x256xf32>
    %13 = tpu.concatenate %4, %5, %6, %7, %8, %9, %10, %11, %12 in 0 : vector<4x256xf32>, vector<4x256xf32>, vector<4x256xf32>, vector<4x256xf32>, vector<4x256xf32>, vector<4x256xf32>, vector<4x256xf32>, vector<4x256xf32>, vector<4x256xf32> -> vector<36x256xf32>
    %cst = arith.constant dense<0.000000e+00> : vector<4x256xf32>
    %14 = tpu.matmul %3, %13, %cst {dimension_numbers = #tpu.dot_dimension_numbers<[1], [0], [0], [1], [0, 0, 1, 1], [], []>, precision = #tpu.contract_precision<fp32>} : vector<4x36xf32>, vector<36x256xf32>, vector<4x256xf32> -> vector<4x256xf32>
    %c0_5 = arith.constant 0 : index
    %c0_6 = arith.constant 0 : index
    %c0_7 = arith.constant 0 : index
    %15 = vector.load %arg3[%c0_5, %c0_6, %c0_7] : memref<2x4x256xf32, #tpu.memory_space<vmem>>, vector<1x4x256xf32>
    %16 = vector.shape_cast %15 : vector<1x4x256xf32> to vector<4x256xf32>
    %17 = vector.shape_cast %14 : vector<4x256xf32> to vector<1x4x256xf32>
    tpu.vector_store %arg3[%c0_5, %c0_6, %c0_7], %17 {strides = array<i32>} : memref<2x4x256xf32, #tpu.memory_space<vmem>>, vector<1x4x256xf32>,
    %c1 = arith.constant 1 : index
    %c0_8 = arith.constant 0 : index
    %c0_9 = arith.constant 0 : index
    %18 = vector.load %arg1[%c1, %c0_8, %c0_9] : memref<2x4x384xf32, #tpu.memory_space<vmem>>, vector<1x4x384xf32>
    %19 = vector.shape_cast %18 : vector<1x4x384xf32> to vector<4x384xf32>
    %c1_10 = arith.constant 1 : index
    %c0_11 = arith.constant 0 : index
    %c0_12 = arith.constant 0 : index
    %20 = vector.load %arg2[%c1_10, %c0_11, %c0_12] : memref<2x4x36xf32, #tpu.memory_space<vmem>>, vector<1x4x36xf32>
    %21 = vector.shape_cast %20 : vector<1x4x36xf32> to vector<4x36xf32>
    %22 = vector.extract_strided_slice %19 {offsets = [0, 0], sizes = [4, 256], strides = [1, 1]} : vector<4x384xf32> to vector<4x256xf32>
    %23 = vector.extract_strided_slice %19 {offsets = [0, 1], sizes = [4, 256], strides = [1, 1]} : vector<4x384xf32> to vector<4x256xf32>
    %24 = vector.extract_strided_slice %19 {offsets = [0, 2], sizes = [4, 256], strides = [1, 1]} : vector<4x384xf32> to vector<4x256xf32>
    %25 = vector.extract_strided_slice %19 {offsets = [0, 18], sizes = [4, 256], strides = [1, 1]} : vector<4x384xf32> to vector<4x256xf32>
    %26 = vector.extract_strided_slice %19 {offsets = [0, 19], sizes = [4, 256], strides = [1, 1]} : vector<4x384xf32> to vector<4x256xf32>
    %27 = vector.extract_strided_slice %19 {offsets = [0, 20], sizes = [4, 256], strides = [1, 1]} : vector<4x384xf32> to vector<4x256xf32>
    %28 = vector.extract_strided_slice %19 {offsets = [0, 36], sizes = [4, 256], strides = [1, 1]} : vector<4x384xf32> to vector<4x256xf32>
    %29 = vector.extract_strided_slice %19 {offsets = [0, 37], sizes = [4, 256], strides = [1, 1]} : vector<4x384xf32> to vector<4x256xf32>
    %30 = vector.extract_strided_slice %19 {offsets = [0, 38], sizes = [4, 256], strides = [1, 1]} : vector<4x384xf32> to vector<4x256xf32>
    %31 = tpu.concatenate %22, %23, %24, %25, %26, %27, %28, %29, %30 in 0 : vector<4x256xf32>, vector<4x256xf32>, vector<4x256xf32>, vector<4x256xf32>, vector<4x256xf32>, vector<4x256xf32>, vector<4x256xf32>, vector<4x256xf32>, vector<4x256xf32> -> vector<36x256xf32>
    %cst_13 = arith.constant dense<0.000000e+00> : vector<4x256xf32>
    %32 = tpu.matmul %21, %31, %cst_13 {dimension_numbers = #tpu.dot_dimension_numbers<[1], [0], [0], [1], [0, 0, 1, 1], [], []>, precision = #tpu.contract_precision<fp32>} : vector<4x36xf32>, vector<36x256xf32>, vector<4x256xf32> -> vector<4x256xf32>
    %c1_14 = arith.constant 1 : index
    %c0_15 = arith.constant 0 : index
    %c0_16 = arith.constant 0 : index
    %33 = vector.load %arg3[%c1_14, %c0_15, %c0_16] : memref<2x4x256xf32, #tpu.memory_space<vmem>>, vector<1x4x256xf32>
    %34 = vector.shape_cast %33 : vector<1x4x256xf32> to vector<4x256xf32>
    %35 = vector.shape_cast %32 : vector<4x256xf32> to vector<1x4x256xf32>
    tpu.vector_store %arg3[%c1_14, %c0_15, %c0_16], %35 {strides = array<i32>} : memref<2x4x256xf32, #tpu.memory_space<vmem>>, vector<1x4x256xf32>,
    return
  }
  func.func @transform_0(%arg0: i32) -> (i32, i32, i32) {
    %c0_i32 = arith.constant 0 : i32
    %c0_i32_0 = arith.constant 0 : i32
    %c0_i32_1 = arith.constant 0 : i32
    return %arg0, %c0_i32, %c0_i32_0 : i32, i32, i32
  }
  func.func @transform_1(%arg0: i32) -> (i32, i32, i32) {
    %c0_i32 = arith.constant 0 : i32
    %c0_i32_0 = arith.constant 0 : i32
    %c0_i32_1 = arith.constant 0 : i32
    return %arg0, %c0_i32, %c0_i32_0 : i32, i32, i32
  }
  func.func @transform_2(%arg0: i32) -> (i32, i32, i32) {
    %c0_i32 = arith.constant 0 : i32
    %c0_i32_0 = arith.constant 0 : i32
    %c0_i32_1 = arith.constant 0 : i32
    return %arg0, %c0_i32, %c0_i32_0 : i32, i32, i32
  }
}

</mosaic_0001>

<llo_original>
// kernel: tpu_custom_call.1
$region0: #{tpu_custom_call.1}
  #allocation0 [shape = 'u32[]', space=smem, size = 0x4, offset = 0x4, fixed_abs, tag = 'smem constant byte address 0x4 - core index']
  #allocation1 [shape = 'u32[144,128]{1,0:T(1,128)}', space=vmem, size = 0x12000, scoped, tag = 'internal scratch']
  %s0 = inlined_call_operand.hbm [shape: f32[2,4,384], index: 0, kind: input, shape index: {}]
  %s1 = inlined_call_operand.hbm [shape: f32[2,4,36], index: 1, kind: input, shape index: {}]
  %s2 = inlined_call_operand.hbm [shape: f32[2,4,256], index: 2, kind: output, shape index: {}]
  %s3 = sld [smem:[#allocation0]]
  $region26: #{tpu_custom_call.1} parent=0
    _
  %s5 = ssub.s32 1, %s3
  %s6 = scalar_select 0, %s5, %s3
  $region1: #{tpu_custom_call.1} parent=0
    #allocation2 [shape = 'u8[12288]{0}', space=vmem, size = 0x3000, scoped, tag = 'input window, operand 0, single buffered']
    #allocation3 [shape = 's32[1]{0}', space=sflag, size = 0x4, scoped, tag = 'scoped memory for tpu_custom_call.1']
    #allocation4 [shape = 's32[1]{0}', space=sflag, size = 0x4, scoped, tag = 'scoped memory for tpu_custom_call.1']
    #allocation5 [shape = 'u8[4096]{0}', space=vmem, size = 0x1000, scoped, tag = 'input window, operand 1, single buffered']
    #allocation6 [shape = 's32[1]{0}', space=sflag, size = 0x4, scoped, tag = 'scoped memory for tpu_custom_call.1']
    #allocation7 [shape = 'u8[8192]{0}', space=vmem, size = 0x2000, scoped, tag = 'output window, operand 0, single buffered']
    %7 = vsyncpa [#allocation3], 0
    %8 = vsyncpa [#allocation6], 0
    %9 = vsyncpa [#allocation4], 0
    // Predicated region
    $region2: #{tpu_custom_call.1} parent=1 // pred_check
      _
    $region3: #{tpu_custom_call.1} parent=1 // pred_check_branch
      %11 = sbr.rel (0) target = $region5
    $region4: #{tpu_custom_call.1} parent=1 // pred_region
      %s13 = ssub.s32 384, 384
      %14 = vsyncadd [#allocation3], %s13
      %s15 = sshll.u32 [#allocation2], 4
      %s16 = int_to_ptr.vmem [resolvable:$true] %s15
      %21 = dma.hbm_to_vmem [thread:$0]  %s0, 384, %s16, [#allocation3], 192, 192, 12
    $region5: #{tpu_custom_call.1} parent=1 // pred_fallthru
      _
    // Predicated region
    $region6: #{tpu_custom_call.1} parent=1 // pred_check
      _
    $region7: #{tpu_custom_call.1} parent=1 // pred_check_branch
      %23 = sbr.rel (0) target = $region9
    $region8: #{tpu_custom_call.1} parent=1 // pred_region
      %s25 = ssub.s32 128, 128
      %26 = vsyncadd [#allocation6], %s25
      %s27 = sshll.u32 [#allocation5], 4
      %s28 = int_to_ptr.vmem [resolvable:$true] %s27
      %33 = dma.hbm_to_vmem [thread:$0]  %s1, 128, %s28, [#allocation6], 64, 64, 4
    $region9: #{tpu_custom_call.1} parent=1 // pred_fallthru
      _
    // Predicated region
    $region10: #{tpu_custom_call.1} parent=1 // pred_check
      _
    $region11: #{tpu_custom_call.1} parent=1 // pred_check_branch
      %35 = sbr.rel (0) target = $region13
    $region12: #{tpu_custom_call.1} parent=1 // pred_region
      %36 = dma.done [#allocation3], 384
    $region13: #{tpu_custom_call.1} parent=1 // pred_fallthru
      _
    // Predicated region
    $region14: #{tpu_custom_call.1} parent=1 // pred_check
      _
    $region15: #{tpu_custom_call.1} parent=1 // pred_check_branch
      %38 = sbr.rel (0) target = $region17
    $region16: #{tpu_custom_call.1} parent=1 // pred_region
      %39 = dma.done [#allocation6], 128
    $region17: #{tpu_custom_call.1} parent=1 // pred_fallthru
      _
    %v40 = vld [vmem:[#allocation2] sm:$0xff]
    %v41 = vld [vmem:[#allocation2 + $0x8] sm:$0xf]
    %v42 = vld [vmem:[#allocation5] sm:$0xf]
    %v44 = vcombine.high %v40, %v40
    %v47 = vcombine.low %v40, %v40
    %v48 = vcombine.low %v41, %v41
    %49 = vrot.lane.b32.xlu0 %v47, 127
    %v50 = vpop.permute.xlu0 %49
    %51 = vrot.lane.b32.xlu0 %v40, 127
    %v52 = vpop.permute.xlu0 %51
    %53 = vrot.lane.b32.xlu0 %v48, 127
    %v54 = vpop.permute.xlu0 %53
    %vm55 = vcmask 1039360
    %v56 = vsel %vm55, %v50, %v52
    %v57 = vsel %vm55, %v52, %v54
    %60 = vrot.lane.b32.xlu0 %v40, 126
    %v61 = vpop.permute.xlu0 %60
    %62 = vrot.lane.b32.xlu0 %v44, 126
    %v63 = vpop.permute.xlu0 %62
    %64 = vrot.lane.b32.xlu0 %v41, 126
    %v65 = vpop.permute.xlu0 %64
    %vm66 = vcmask 1031168
    %v67 = vsel %vm66, %v61, %v63
    %v68 = vsel %vm66, %v63, %v65
    %71 = vrot.lane.b32.xlu0 %v47, 110
    %v72 = vpop.permute.xlu0 %71
    %73 = vrot.lane.b32.xlu0 %v40, 110
    %v74 = vpop.permute.xlu0 %73
    %75 = vrot.lane.b32.xlu0 %v48, 110
    %v76 = vpop.permute.xlu0 %75
    %vm77 = vcmask 900096
    %v78 = vsel %vm77, %v72, %v74
    %v79 = vsel %vm77, %v74, %v76
    %82 = vrot.lane.b32.xlu0 %v40, 109
    %v83 = vpop.permute.xlu0 %82
    %84 = vrot.lane.b32.xlu0 %v44, 109
    %v85 = vpop.permute.xlu0 %84
    %86 = vrot.lane.b32.xlu0 %v41, 109
    %v87 = vpop.permute.xlu0 %86
    %vm88 = vcmask 891904
    %v89 = vsel %vm88, %v83, %v85
    %v90 = vsel %vm88, %v85, %v87
    %93 = vrot.lane.b32.xlu0 %v47, 108
    %v94 = vpop.permute.xlu0 %93
    %95 = vrot.lane.b32.xlu0 %v40, 108
    %v96 = vpop.permute.xlu0 %95
    %97 = vrot.lane.b32.xlu0 %v48, 108
    %v98 = vpop.permute.xlu0 %97
    %vm99 = vcmask 883712
    %v100 = vsel %vm99, %v94, %v96
    %v101 = vsel %vm99, %v96, %v98
    %104 = vrot.lane.b32.xlu0 %v40, 92
    %v105 = vpop.permute.xlu0 %104
    %106 = vrot.lane.b32.xlu0 %v44, 92
    %v107 = vpop.permute.xlu0 %106
    %108 = vrot.lane.b32.xlu0 %v41, 92
    %v109 = vpop.permute.xlu0 %108
    %vm110 = vcmask 752640
    %v111 = vsel %vm110, %v105, %v107
    %v112 = vsel %vm110, %v107, %v109
    %115 = vrot.lane.b32.xlu0 %v47, 91
    %v116 = vpop.permute.xlu0 %115
    %117 = vrot.lane.b32.xlu0 %v40, 91
    %v118 = vpop.permute.xlu0 %117
    %119 = vrot.lane.b32.xlu0 %v48, 91
    %v120 = vpop.permute.xlu0 %119
    %vm121 = vcmask 744448
    %v122 = vsel %vm121, %v116, %v118
    %v123 = vsel %vm121, %v118, %v120
    %126 = vrot.lane.b32.xlu0 %v40, 90
    %v127 = vpop.permute.xlu0 %126
    %128 = vrot.lane.b32.xlu0 %v44, 90
    %v129 = vpop.permute.xlu0 %128
    %130 = vrot.lane.b32.xlu0 %v41, 90
    %v131 = vpop.permute.xlu0 %130
    %vm132 = vcmask 736256
    %v133 = vsel %vm132, %v127, %v129
    %v134 = vsel %vm132, %v129, %v131
    %vm135 = vcmask 1043456
    %v136 = vsel %vm135, %v40, %v56
    %v137 = vsel %vm135, %v44, %v57
    %v138 = vsel %vm135, %v67, %v78
    %v139 = vsel %vm135, %v68, %v79
    %v140 = vsel %vm135, %v89, %v100
    %v141 = vsel %vm135, %v90, %v101
    %v142 = vsel %vm135, %v111, %v122
    %v143 = vsel %vm135, %v112, %v123
    %vm144 = vcmask 293888
    %v146 = vsel %vm144, %v42, 0
    %v148 = vsel %vm135, %v133, 0
    %v150 = vsel %vm135, %v134, 0
    %v152 = vand.u32 %v137, 4294901760
    %153 = vmatprep.subr.mxu0 %v152
    %v154 = vand.u32 %v136, 4294901760
    %155 = vmatpush1.msra.mxu0 %v154
    %v156 = vand.u32 %v139, 4294901760
    %157 = vmatprep.subr.mxu0 %v156
    %v158 = vand.u32 %v138, 4294901760
    %159 = vmatpush1.msra.mxu0 %v158
    %v160 = vand.u32 %v141, 4294901760
    %161 = vmatprep.subr.mxu0 %v160
    %v162 = vand.u32 %v140, 4294901760
    %163 = vmatpush1.msra.mxu0 %v162
    %v164 = vand.u32 %v143, 4294901760
    %165 = vmatprep.subr.mxu0 %v164
    %v166 = vand.u32 %v142, 4294901760
    %167 = vmatpush1.msra.mxu0 %v166
    %v168 = vand.u32 %v150, 4294901760
    %169 = vmatprep.subr.mxu0 %v168
    %v170 = vand.u32 %v148, 4294901760
    %171 = vmatpush1.msra.mxu0 %v170
    %172 = vmatprep.subr.mxu0 0.0
    %173 = vmatpush1.msra.mxu0 0.0
    %174 = vmatprep.subr.mxu0 0.0
    %175 = vmatpush1.msra.mxu0 0.0
    %176 = vmatprep.subr.mxu0 0.0
    %177 = vmatpush1.msra.mxu0 0.0
    %178 = vmatprep.subr.mxu0 0.0
    %179 = vmatpush1.msra.mxu0 0.0
    %180 = vmatprep.subr.mxu0 0.0
    %181 = vmatpush1.msra.mxu0 0.0
    %182 = vmatprep.subr.mxu0 0.0
    %183 = vmatpush1.msra.mxu0 0.0
    %184 = vmatprep.subr.mxu0 0.0
    %185 = vmatpush1.msra.mxu0 0.0
    %186 = vmatprep.subr.mxu0 0.0
    %187 = vmatpush1.msra.mxu0 0.0
    %188 = vmatprep.subr.mxu0 0.0
    %189 = vmatpush1.msra.mxu0 0.0
    %190 = vmatprep.subr.mxu0 0.0
    %191 = vmatpush1.msra.mxu0 0.0
    %192 = vmatprep.subr.mxu0 0.0
    %193 = vmatpush1.msra.mxu0 0.0
    %194 = vmatprep.subr.mxu0 0.0
    %195 = vmatpush1.msra.mxu0 0.0
    %196 = vmatprep.subr.mxu0 0.0
    %197 = vmatpush1.msra.mxu0 0.0
    %198 = vmatprep.subr.mxu0 0.0
    %199 = vmatpush1.msra.mxu0 0.0
    %200 = vmatprep.subr.mxu0 0.0
    %201 = vmatpush1.msra.mxu0 0.0
    %202 = vmatprep.subr.mxu0 0.0
    %203 = vmatpush1.msra.mxu0 0.0
    %204 = vmatprep.subr.mxu0 0.0
    %205 = vmatpush1.msra.mxu0 0.0
    %206 = vmatprep.subr.mxu0 0.0
    %207 = vmatpush1.msra.mxu0 0.0
    %208 = vmatprep.subr.mxu0 0.0
    %209 = vmatpush1.msra.mxu0 0.0
    %210 = vmatprep.subr.mxu0 0.0
    %211 = vmatpush1.msra.mxu0 0.0
    %212 = vmatprep.subr.mxu0 0.0
    %213 = vmatpush1.msra.mxu0 0.0
    %214 = vmatprep.subr.mxu0 0.0
    %215 = vmatpush1.msra.mxu0 0.0
    %216 = vmatprep.subr.mxu0 0.0
    %217 = vmatpush1.msra.mxu0 0.0
    %218 = vmatprep.subr.mxu0 0.0
    %219 = vmatpush1.msra.mxu0 0.0
    %220 = vmatprep.subr.mxu0 0.0
    %221 = vmatpush1.msra.mxu0 0.0
    %222 = vmatprep.subr.mxu0 0.0
    %223 = vmatpush1.msra.mxu0 0.0
    %224 = vmatprep.subr.mxu0 0.0
    %225 = vmatpush1.msra.mxu0 0.0
    %226 = vmatprep.mubr.f32.mxu0 0.0
    %v227 = vand.u32 %v146, 4294901760
    %v228 = vsub.f32 %v146, %v227
    %v229 = vand.u32 %v228, 4294901760
    %v230 = vsub.f32 %v228, %v229
    %v231 = vand.u32 %v230, 4294901760
    %232 = vmatmul.mubr.f32.gmra.mrb[0].mxu0 %v231
    %v233 = vpop.f32.mrb[0].mxu0
    %v234 = vadd.f32 0.0, %v233
    %v235 = vpop.f32.mrb[0].mxu0
    %v236 = vadd.f32 0.0, %v235
    %237 = vdwg.mxu0
    %v238 = vand.u32 %v137, 4294901760
    %v239 = vsub.f32 %v137, %v238
    %v240 = vand.u32 %v239, 4294901760
    %v241 = vsub.f32 %v239, %v240
    %v242 = vand.u32 %v241, 4294901760
    %243 = vmatprep.subr.mxu0 %v242
    %v244 = vand.u32 %v136, 4294901760
    %v245 = vsub.f32 %v136, %v244
    %v246 = vand.u32 %v245, 4294901760
    %v247 = vsub.f32 %v245, %v246
    %v248 = vand.u32 %v247, 4294901760
    %249 = vmatpush1.msra.mxu0 %v248
    %v250 = vand.u32 %v139, 4294901760
    %v251 = vsub.f32 %v139, %v250
    %v252 = vand.u32 %v251, 4294901760
    %v253 = vsub.f32 %v251, %v252
    %v254 = vand.u32 %v253, 4294901760
    %255 = vmatprep.subr.mxu0 %v254
    %v256 = vand.u32 %v138, 4294901760
    %v257 = vsub.f32 %v138, %v256
    %v258 = vand.u32 %v257, 4294901760
    %v259 = vsub.f32 %v257, %v258
    %v260 = vand.u32 %v259, 4294901760
    %261 = vmatpush1.msra.mxu0 %v260
    %v262 = vand.u32 %v141, 4294901760
    %v263 = vsub.f32 %v141, %v262
    %v264 = vand.u32 %v263, 4294901760
    %v265 = vsub.f32 %v263, %v264
    %v266 = vand.u32 %v265, 4294901760
    %267 = vmatprep.subr.mxu0 %v266
    %v268 = vand.u32 %v140, 4294901760
    %v269 = vsub.f32 %v140, %v268
    %v270 = vand.u32 %v269, 4294901760
    %v271 = vsub.f32 %v269, %v270
    %v272 = vand.u32 %v271, 4294901760
    %273 = vmatpush1.msra.mxu0 %v272
    %v274 = vand.u32 %v143, 4294901760
    %v275 = vsub.f32 %v143, %v274
    %v276 = vand.u32 %v275, 4294901760
    %v277 = vsub.f32 %v275, %v276
    %v278 = vand.u32 %v277, 4294901760
    %279 = vmatprep.subr.mxu0 %v278
    %v280 = vand.u32 %v142, 4294901760
    %v281 = vsub.f32 %v142, %v280
    %v282 = vand.u32 %v281, 4294901760
    %v283 = vsub.f32 %v281, %v282
    %v284 = vand.u32 %v283, 4294901760
    %285 = vmatpush1.msra.mxu0 %v284
    %v286 = vand.u32 %v150, 4294901760
    %v287 = vsub.f32 %v150, %v286
    %v288 = vand.u32 %v287, 4294901760
    %v289 = vsub.f32 %v287, %v288
    %v290 = vand.u32 %v289, 4294901760
    %291 = vmatprep.subr.mxu0 %v290
    %v292 = vand.u32 %v148, 4294901760
    %v293 = vsub.f32 %v148, %v292
    %v294 = vand.u32 %v293, 4294901760
    %v295 = vsub.f32 %v293, %v294
    %v296 = vand.u32 %v295, 4294901760
    %297 = vmatpush1.msra.mxu0 %v296
    %298 = vmatprep.subr.mxu0 0.0
    %299 = vmatpush1.msra.mxu0 0.0
    %300 = vmatprep.subr.mxu0 0.0
    %301 = vmatpush1.msra.mxu0 0.0
    %302 = vmatprep.subr.mxu0 0.0
    %303 = vmatpush1.msra.mxu0 0.0
    %304 = vmatprep.subr.mxu0 0.0
    %305 = vmatpush1.msra.mxu0 0.0
    %306 = vmatprep.subr.mxu0 0.0
    %307 = vmatpush1.msra.mxu0 0.0
    %308 = vmatprep.subr.mxu0 0.0
    %309 = vmatpush1.msra.mxu0 0.0
    %310 = vmatprep.subr.mxu0 0.0
    %311 = vmatpush1.msra.mxu0 0.0
    %312 = vmatprep.subr.mxu0 0.0
    %313 = vmatpush1.msra.mxu0 0.0
    %314 = vmatprep.subr.mxu0 0.0
    %315 = vmatpush1.msra.mxu0 0.0
    %316 = vmatprep.subr.mxu0 0.0
    %317 = vmatpush1.msra.mxu0 0.0
    %318 = vmatprep.subr.mxu0 0.0
    %319 = vmatpush1.msra.mxu0 0.0
    %320 = vmatprep.subr.mxu0 0.0
    %321 = vmatpush1.msra.mxu0 0.0
    %322 = vmatprep.subr.mxu0 0.0
    %323 = vmatpush1.msra.mxu0 0.0
    %324 = vmatprep.subr.mxu0 0.0
    %325 = vmatpush1.msra.mxu0 0.0
    %326 = vmatprep.subr.mxu0 0.0
    %327 = vmatpush1.msra.mxu0 0.0
    %328 = vmatprep.subr.mxu0 0.0
    %329 = vmatpush1.msra.mxu0 0.0
    %330 = vmatprep.subr.mxu0 0.0
    %331 = vmatpush1.msra.mxu0 0.0
    %332 = vmatprep.subr.mxu0 0.0
    %333 = vmatpush1.msra.mxu0 0.0
    %334 = vmatprep.subr.mxu0 0.0
    %335 = vmatpush1.msra.mxu0 0.0
    %336 = vmatprep.subr.mxu0 0.0
    %337 = vmatpush1.msra.mxu0 0.0
    %338 = vmatprep.subr.mxu0 0.0
    %339 = vmatpush1.msra.mxu0 0.0
    %340 = vmatprep.subr.mxu0 0.0
    %341 = vmatpush1.msra.mxu0 0.0
    %342 = vmatprep.subr.mxu0 0.0
    %343 = vmatpush1.msra.mxu0 0.0
    %344 = vmatprep.subr.mxu0 0.0
    %345 = vmatpush1.msra.mxu0 0.0
    %346 = vmatprep.subr.mxu0 0.0
    %347 = vmatpush1.msra.mxu0 0.0
    %348 = vmatprep.subr.mxu0 0.0
    %349 = vmatpush1.msra.mxu0 0.0
    %350 = vmatprep.subr.mxu0 0.0
    %351 = vmatpush1.msra.mxu0 0.0
    %352 = vmatprep.mubr.f32.mxu0 0.0
    %v353 = vand.u32 %v146, 4294901760
    %354 = vmatmul.mubr.f32.gmra.mrb[0].mxu0 %v353
    %v355 = vpop.f32.mrb[0].mxu0
    %v356 = vadd.f32 %v234, %v355
    %v357 = vpop.f32.mrb[0].mxu0
    %v358 = vadd.f32 %v236, %v357
    %359 = vdwg.mxu0
    %v360 = vand.u32 %v137, 4294901760
    %v361 = vsub.f32 %v137, %v360
    %362 = vmatprep.subr.mxu0 %v361
    %v363 = vand.u32 %v136, 4294901760
    %v364 = vsub.f32 %v136, %v363
    %365 = vmatpush1.msra.mxu0 %v364
    %v366 = vand.u32 %v139, 4294901760
    %v367 = vsub.f32 %v139, %v366
    %368 = vmatprep.subr.mxu0 %v367
    %v369 = vand.u32 %v138, 4294901760
    %v370 = vsub.f32 %v138, %v369
    %371 = vmatpush1.msra.mxu0 %v370
    %v372 = vand.u32 %v141, 4294901760
    %v373 = vsub.f32 %v141, %v372
    %374 = vmatprep.subr.mxu0 %v373
    %v375 = vand.u32 %v140, 4294901760
    %v376 = vsub.f32 %v140, %v375
    %377 = vmatpush1.msra.mxu0 %v376
    %v378 = vand.u32 %v143, 4294901760
    %v379 = vsub.f32 %v143, %v378
    %380 = vmatprep.subr.mxu0 %v379
    %v381 = vand.u32 %v142, 4294901760
    %v382 = vsub.f32 %v142, %v381
    %383 = vmatpush1.msra.mxu0 %v382
    %v384 = vand.u32 %v150, 4294901760
    %v385 = vsub.f32 %v150, %v384
    %386 = vmatprep.subr.mxu0 %v385
    %v387 = vand.u32 %v148, 4294901760
    %v388 = vsub.f32 %v148, %v387
    %389 = vmatpush1.msra.mxu0 %v388
    %390 = vmatprep.subr.mxu0 0.0
    %391 = vmatpush1.msra.mxu0 0.0
    %392 = vmatprep.subr.mxu0 0.0
    %393 = vmatpush1.msra.mxu0 0.0
    %394 = vmatprep.subr.mxu0 0.0
    %395 = vmatpush1.msra.mxu0 0.0
    %396 = vmatprep.subr.mxu0 0.0
    %397 = vmatpush1.msra.mxu0 0.0
    %398 = vmatprep.subr.mxu0 0.0
    %399 = vmatpush1.msra.mxu0 0.0
    %400 = vmatprep.subr.mxu0 0.0
    %401 = vmatpush1.msra.mxu0 0.0
    %402 = vmatprep.subr.mxu0 0.0
    %403 = vmatpush1.msra.mxu0 0.0
    %404 = vmatprep.subr.mxu0 0.0
    %405 = vmatpush1.msra.mxu0 0.0
    %406 = vmatprep.subr.mxu0 0.0
    %407 = vmatpush1.msra.mxu0 0.0
    %408 = vmatprep.subr.mxu0 0.0
    %409 = vmatpush1.msra.mxu0 0.0
    %410 = vmatprep.subr.mxu0 0.0
    %411 = vmatpush1.msra.mxu0 0.0
    %412 = vmatprep.subr.mxu0 0.0
    %413 = vmatpush1.msra.mxu0 0.0
    %414 = vmatprep.subr.mxu0 0.0
    %415 = vmatpush1.msra.mxu0 0.0
    %416 = vmatprep.subr.mxu0 0.0
    %417 = vmatpush1.msra.mxu0 0.0
    %418 = vmatprep.subr.mxu0 0.0
    %419 = vmatpush1.msra.mxu0 0.0
    %420 = vmatprep.subr.mxu0 0.0
    %421 = vmatpush1.msra.mxu0 0.0
    %422 = vmatprep.subr.mxu0 0.0
    %423 = vmatpush1.msra.mxu0 0.0
    %424 = vmatprep.subr.mxu0 0.0
    %425 = vmatpush1.msra.mxu0 0.0
    %426 = vmatprep.subr.mxu0 0.0
    %427 = vmatpush1.msra.mxu0 0.0
    %428 = vmatprep.subr.mxu0 0.0
    %429 = vmatpush1.msra.mxu0 0.0
    %430 = vmatprep.subr.mxu0 0.0
    %431 = vmatpush1.msra.mxu0 0.0
    %432 = vmatprep.subr.mxu0 0.0
    %433 = vmatpush1.msra.mxu0 0.0
    %434 = vmatprep.subr.mxu0 0.0
    %435 = vmatpush1.msra.mxu0 0.0
    %436 = vmatprep.subr.mxu0 0.0
    %437 = vmatpush1.msra.mxu0 0.0
    %438 = vmatprep.subr.mxu0 0.0
    %439 = vmatpush1.msra.mxu0 0.0
    %440 = vmatprep.subr.mxu0 0.0
    %441 = vmatpush1.msra.mxu0 0.0
    %442 = vmatprep.subr.mxu0 0.0
    %443 = vmatpush1.msra.mxu0 0.0
    %444 = vmatprep.mubr.f32.mxu0 0.0
    %v445 = vand.u32 %v146, 4294901760
    %v446 = vsub.f32 %v146, %v445
    %447 = vmatmul.mubr.f32.gmra.mrb[0].mxu0 %v446
    %v448 = vpop.f32.mrb[0].mxu0
    %v449 = vadd.f32 %v356, %v448
    %v450 = vpop.f32.mrb[0].mxu0
    %v451 = vadd.f32 %v358, %v450
    %452 = vdwg.mxu0
    %v453 = vand.u32 %v137, 4294901760
    %454 = vmatprep.subr.mxu0 %v453
    %v455 = vand.u32 %v136, 4294901760
    %456 = vmatpush1.msra.mxu0 %v455
    %v457 = vand.u32 %v139, 4294901760
    %458 = vmatprep.subr.mxu0 %v457
    %v459 = vand.u32 %v138, 4294901760
    %460 = vmatpush1.msra.mxu0 %v459
    %v461 = vand.u32 %v141, 4294901760
    %462 = vmatprep.subr.mxu0 %v461
    %v463 = vand.u32 %v140, 4294901760
    %464 = vmatpush1.msra.mxu0 %v463
    %v465 = vand.u32 %v143, 4294901760
    %466 = vmatprep.subr.mxu0 %v465
    %v467 = vand.u32 %v142, 4294901760
    %468 = vmatpush1.msra.mxu0 %v467
    %v469 = vand.u32 %v150, 4294901760
    %470 = vmatprep.subr.mxu0 %v469
    %v471 = vand.u32 %v148, 4294901760
    %472 = vmatpush1.msra.mxu0 %v471
    %473 = vmatprep.subr.mxu0 0.0
    %474 = vmatpush1.msra.mxu0 0.0
    %475 = vmatprep.subr.mxu0 0.0
    %476 = vmatpush1.msra.mxu0 0.0
    %477 = vmatprep.subr.mxu0 0.0
    %478 = vmatpush1.msra.mxu0 0.0
    %479 = vmatprep.subr.mxu0 0.0
    %480 = vmatpush1.msra.mxu0 0.0
    %481 = vmatprep.subr.mxu0 0.0
    %482 = vmatpush1.msra.mxu0 0.0
    %483 = vmatprep.subr.mxu0 0.0
    %484 = vmatpush1.msra.mxu0 0.0
    %485 = vmatprep.subr.mxu0 0.0
    %486 = vmatpush1.msra.mxu0 0.0
    %487 = vmatprep.subr.mxu0 0.0
    %488 = vmatpush1.msra.mxu0 0.0
    %489 = vmatprep.subr.mxu0 0.0
    %490 = vmatpush1.msra.mxu0 0.0
    %491 = vmatprep.subr.mxu0 0.0
    %492 = vmatpush1.msra.mxu0 0.0
    %493 = vmatprep.subr.mxu0 0.0
    %494 = vmatpush1.msra.mxu0 0.0
    %495 = vmatprep.subr.mxu0 0.0
    %496 = vmatpush1.msra.mxu0 0.0
    %497 = vmatprep.subr.mxu0 0.0
    %498 = vmatpush1.msra.mxu0 0.0
    %499 = vmatprep.subr.mxu0 0.0
    %500 = vmatpush1.msra.mxu0 0.0
    %501 = vmatprep.subr.mxu0 0.0
    %502 = vmatpush1.msra.mxu0 0.0
    %503 = vmatprep.subr.mxu0 0.0
    %504 = vmatpush1.msra.mxu0 0.0
    %505 = vmatprep.subr.mxu0 0.0
    %506 = vmatpush1.msra.mxu0 0.0
    %507 = vmatprep.subr.mxu0 0.0
    %508 = vmatpush1.msra.mxu0 0.0
    %509 = vmatprep.subr.mxu0 0.0
    %510 = vmatpush1.msra.mxu0 0.0
    %511 = vmatprep.subr.mxu0 0.0
    %512 = vmatpush1.msra.mxu0 0.0
    %513 = vmatprep.subr.mxu0 0.0
    %514 = vmatpush1.msra.mxu0 0.0
    %515 = vmatprep.subr.mxu0 0.0
    %516 = vmatpush1.msra.mxu0 0.0
    %517 = vmatprep.subr.mxu0 0.0
    %518 = vmatpush1.msra.mxu0 0.0
    %519 = vmatprep.subr.mxu0 0.0
    %520 = vmatpush1.msra.mxu0 0.0
    %521 = vmatprep.subr.mxu0 0.0
    %522 = vmatpush1.msra.mxu0 0.0
    %523 = vmatprep.subr.mxu0 0.0
    %524 = vmatpush1.msra.mxu0 0.0
    %525 = vmatprep.subr.mxu0 0.0
    %526 = vmatpush1.msra.mxu0 0.0
    %527 = vmatprep.mubr.f32.mxu0 0.0
    %v528 = vand.u32 %v146, 4294901760
    %v529 = vsub.f32 %v146, %v528
    %v530 = vand.u32 %v529, 4294901760
    %531 = vmatmul.mubr.f32.gmra.mrb[0].mxu0 %v530
    %v532 = vpop.f32.mrb[0].mxu0
    %v533 = vadd.f32 %v449, %v532
    %v534 = vpop.f32.mrb[0].mxu0
    %v535 = vadd.f32 %v451, %v534
    %536 = vdwg.mxu0
    %v537 = vand.u32 %v137, 4294901760
    %v538 = vsub.f32 %v137, %v537
    %v539 = vand.u32 %v538, 4294901760
    %540 = vmatprep.subr.mxu0 %v539
    %v541 = vand.u32 %v136, 4294901760
    %v542 = vsub.f32 %v136, %v541
    %v543 = vand.u32 %v542, 4294901760
    %544 = vmatpush1.msra.mxu0 %v543
    %v545 = vand.u32 %v139, 4294901760
    %v546 = vsub.f32 %v139, %v545
    %v547 = vand.u32 %v546, 4294901760
    %548 = vmatprep.subr.mxu0 %v547
    %v549 = vand.u32 %v138, 4294901760
    %v550 = vsub.f32 %v138, %v549
    %v551 = vand.u32 %v550, 4294901760
    %552 = vmatpush1.msra.mxu0 %v551
    %v553 = vand.u32 %v141, 4294901760
    %v554 = vsub.f32 %v141, %v553
    %v555 = vand.u32 %v554, 4294901760
    %556 = vmatprep.subr.mxu0 %v555
    %v557 = vand.u32 %v140, 4294901760
    %v558 = vsub.f32 %v140, %v557
    %v559 = vand.u32 %v558, 4294901760
    %560 = vmatpush1.msra.mxu0 %v559
    %v561 = vand.u32 %v143, 4294901760
    %v562 = vsub.f32 %v143, %v561
    %v563 = vand.u32 %v562, 4294901760
    %564 = vmatprep.subr.mxu0 %v563
    %v565 = vand.u32 %v142, 4294901760
    %v566 = vsub.f32 %v142, %v565
    %v567 = vand.u32 %v566, 4294901760
    %568 = vmatpush1.msra.mxu0 %v567
    %v569 = vand.u32 %v150, 4294901760
    %v570 = vsub.f32 %v150, %v569
    %v571 = vand.u32 %v570, 4294901760
    %572 = vmatprep.subr.mxu0 %v571
    %v573 = vand.u32 %v148, 4294901760
    %v574 = vsub.f32 %v148, %v573
    %v575 = vand.u32 %v574, 4294901760
    %576 = vmatpush1.msra.mxu0 %v575
    %577 = vmatprep.subr.mxu0 0.0
    %578 = vmatpush1.msra.mxu0 0.0
    %579 = vmatprep.subr.mxu0 0.0
    %580 = vmatpush1.msra.mxu0 0.0
    %581 = vmatprep.subr.mxu0 0.0
    %582 = vmatpush1.msra.mxu0 0.0
    %583 = vmatprep.subr.mxu0 0.0
    %584 = vmatpush1.msra.mxu0 0.0
    %585 = vmatprep.subr.mxu0 0.0
    %586 = vmatpush1.msra.mxu0 0.0
    %587 = vmatprep.subr.mxu0 0.0
    %588 = vmatpush1.msra.mxu0 0.0
    %589 = vmatprep.subr.mxu0 0.0
    %590 = vmatpush1.msra.mxu0 0.0
    %591 = vmatprep.subr.mxu0 0.0
    %592 = vmatpush1.msra.mxu0 0.0
    %593 = vmatprep.subr.mxu0 0.0
    %594 = vmatpush1.msra.mxu0 0.0
    %595 = vmatprep.subr.mxu0 0.0
    %596 = vmatpush1.msra.mxu0 0.0
    %597 = vmatprep.subr.mxu0 0.0
    %598 = vmatpush1.msra.mxu0 0.0
    %599 = vmatprep.subr.mxu0 0.0
    %600 = vmatpush1.msra.mxu0 0.0
    %601 = vmatprep.subr.mxu0 0.0
    %602 = vmatpush1.msra.mxu0 0.0
    %603 = vmatprep.subr.mxu0 0.0
    %604 = vmatpush1.msra.mxu0 0.0
    %605 = vmatprep.subr.mxu0 0.0
    %606 = vmatpush1.msra.mxu0 0.0
    %607 = vmatprep.subr.mxu0 0.0
    %608 = vmatpush1.msra.mxu0 0.0
    %609 = vmatprep.subr.mxu0 0.0
    %610 = vmatpush1.msra.mxu0 0.0
    %611 = vmatprep.subr.mxu0 0.0
    %612 = vmatpush1.msra.mxu0 0.0
    %613 = vmatprep.subr.mxu0 0.0
    %614 = vmatpush1.msra.mxu0 0.0
    %615 = vmatprep.subr.mxu0 0.0
    %616 = vmatpush1.msra.mxu0 0.0
    %617 = vmatprep.subr.mxu0 0.0
    %618 = vmatpush1.msra.mxu0 0.0
    %619 = vmatprep.subr.mxu0 0.0
    %620 = vmatpush1.msra.mxu0 0.0
    %621 = vmatprep.subr.mxu0 0.0
    %622 = vmatpush1.msra.mxu0 0.0
    %623 = vmatprep.subr.mxu0 0.0
    %624 = vmatpush1.msra.mxu0 0.0
    %625 = vmatprep.subr.mxu0 0.0
    %626 = vmatpush1.msra.mxu0 0.0
    %627 = vmatprep.subr.mxu0 0.0
    %628 = vmatpush1.msra.mxu0 0.0
    %629 = vmatprep.subr.mxu0 0.0
    %630 = vmatpush1.msra.mxu0 0.0
    %631 = vmatprep.mubr.f32.mxu0 0.0
    %v632 = vand.u32 %v146, 4294901760
    %633 = vmatmul.mubr.f32.gmra.mrb[0].mxu0 %v632
    %v634 = vpop.f32.mrb[0].mxu0
    %v635 = vadd.f32 %v533, %v634
    %v636 = vpop.f32.mrb[0].mxu0
    %v637 = vadd.f32 %v535, %v636
    %638 = vdwg.mxu0
    %v639 = vand.u32 %v137, 4294901760
    %640 = vmatprep.subr.mxu0 %v639
    %v641 = vand.u32 %v136, 4294901760
    %642 = vmatpush1.msra.mxu0 %v641
    %v643 = vand.u32 %v139, 4294901760
    %644 = vmatprep.subr.mxu0 %v643
    %v645 = vand.u32 %v138, 4294901760
    %646 = vmatpush1.msra.mxu0 %v645
    %v647 = vand.u32 %v141, 4294901760
    %648 = vmatprep.subr.mxu0 %v647
    %v649 = vand.u32 %v140, 4294901760
    %650 = vmatpush1.msra.mxu0 %v649
    %v651 = vand.u32 %v143, 4294901760
    %652 = vmatprep.subr.mxu0 %v651
    %v653 = vand.u32 %v142, 4294901760
    %654 = vmatpush1.msra.mxu0 %v653
    %v655 = vand.u32 %v150, 4294901760
    %656 = vmatprep.subr.mxu0 %v655
    %v657 = vand.u32 %v148, 4294901760
    %658 = vmatpush1.msra.mxu0 %v657
    %659 = vmatprep.subr.mxu0 0.0
    %660 = vmatpush1.msra.mxu0 0.0
    %661 = vmatprep.subr.mxu0 0.0
    %662 = vmatpush1.msra.mxu0 0.0
    %663 = vmatprep.subr.mxu0 0.0
    %664 = vmatpush1.msra.mxu0 0.0
    %665 = vmatprep.subr.mxu0 0.0
    %666 = vmatpush1.msra.mxu0 0.0
    %667 = vmatprep.subr.mxu0 0.0
    %668 = vmatpush1.msra.mxu0 0.0
    %669 = vmatprep.subr.mxu0 0.0
    %670 = vmatpush1.msra.mxu0 0.0
    %671 = vmatprep.subr.mxu0 0.0
    %672 = vmatpush1.msra.mxu0 0.0
    %673 = vmatprep.subr.mxu0 0.0
    %674 = vmatpush1.msra.mxu0 0.0
    %675 = vmatprep.subr.mxu0 0.0
    %676 = vmatpush1.msra.mxu0 0.0
    %677 = vmatprep.subr.mxu0 0.0
    %678 = vmatpush1.msra.mxu0 0.0
    %679 = vmatprep.subr.mxu0 0.0
    %680 = vmatpush1.msra.mxu0 0.0
    %681 = vmatprep.subr.mxu0 0.0
    %682 = vmatpush1.msra.mxu0 0.0
    %683 = vmatprep.subr.mxu0 0.0
    %684 = vmatpush1.msra.mxu0 0.0
    %685 = vmatprep.subr.mxu0 0.0
    %686 = vmatpush1.msra.mxu0 0.0
    %687 = vmatprep.subr.mxu0 0.0
    %688 = vmatpush1.msra.mxu0 0.0
    %689 = vmatprep.subr.mxu0 0.0
    %690 = vmatpush1.msra.mxu0 0.0
    %691 = vmatprep.subr.mxu0 0.0
    %692 = vmatpush1.msra.mxu0 0.0
    %693 = vmatprep.subr.mxu0 0.0
    %694 = vmatpush1.msra.mxu0 0.0
    %695 = vmatprep.subr.mxu0 0.0
    %696 = vmatpush1.msra.mxu0 0.0
    %697 = vmatprep.subr.mxu0 0.0
    %698 = vmatpush1.msra.mxu0 0.0
    %699 = vmatprep.subr.mxu0 0.0
    %700 = vmatpush1.msra.mxu0 0.0
    %701 = vmatprep.subr.mxu0 0.0
    %702 = vmatpush1.msra.mxu0 0.0
    %703 = vmatprep.subr.mxu0 0.0
    %704 = vmatpush1.msra.mxu0 0.0
    %705 = vmatprep.subr.mxu0 0.0
    %706 = vmatpush1.msra.mxu0 0.0
    %707 = vmatprep.subr.mxu0 0.0
    %708 = vmatpush1.msra.mxu0 0.0
    %709 = vmatprep.subr.mxu0 0.0
    %710 = vmatpush1.msra.mxu0 0.0
    %711 = vmatprep.subr.mxu0 0.0
    %712 = vmatpush1.msra.mxu0 0.0
    %713 = vmatprep.mubr.f32.mxu0 0.0
    %v714 = vand.u32 %v146, 4294901760
    %715 = vmatmul.mubr.f32.gmra.mrb[0].mxu0 %v714
    %v716 = vpop.f32.mrb[0].mxu0
    %v717 = vadd.f32 %v635, %v716
    %v718 = vpop.f32.mrb[0].mxu0
    %v719 = vadd.f32 %v637, %v718
    %720 = vdwg.mxu0
    %v723 = vcombine.low %v717, %v719
    %725 = vst [vmem:[#allocation7] sm:$0xff] %v723
    %s726 = scalar_lea.vmem [#allocation2], 12
    %v727 = vld [vmem:[%s726] sm:$0xff]
    %v728 = vld [vmem:[%s726 + $0x8] sm:$0xf]
    %s729 = scalar_lea.vmem [#allocation5], 4
    %v730 = vld [vmem:[%s729] sm:$0xf]
    %v732 = vcombine.high %v727, %v727
    %v735 = vcombine.low %v727, %v727
    %v736 = vcombine.low %v728, %v728
    %737 = vrot.lane.b32.xlu0 %v735, 127
    %v738 = vpop.permute.xlu0 %737
    %739 = vrot.lane.b32.xlu0 %v727, 127
    %v740 = vpop.permute.xlu0 %739
    %741 = vrot.lane.b32.xlu0 %v736, 127
    %v742 = vpop.permute.xlu0 %741
    %v743 = vsel %vm55, %v738, %v740
    %v744 = vsel %vm55, %v740, %v742
    %747 = vrot.lane.b32.xlu0 %v727, 126
    %v748 = vpop.permute.xlu0 %747
    %749 = vrot.lane.b32.xlu0 %v732, 126
    %v750 = vpop.permute.xlu0 %749
    %751 = vrot.lane.b32.xlu0 %v728, 126
    %v752 = vpop.permute.xlu0 %751
    %v753 = vsel %vm66, %v748, %v750
    %v754 = vsel %vm66, %v750, %v752
    %757 = vrot.lane.b32.xlu0 %v735, 110
    %v758 = vpop.permute.xlu0 %757
    %759 = vrot.lane.b32.xlu0 %v727, 110
    %v760 = vpop.permute.xlu0 %759
    %761 = vrot.lane.b32.xlu0 %v736, 110
    %v762 = vpop.permute.xlu0 %761
    %v763 = vsel %vm77, %v758, %v760
    %v764 = vsel %vm77, %v760, %v762
    %767 = vrot.lane.b32.xlu0 %v727, 109
    %v768 = vpop.permute.xlu0 %767
    %769 = vrot.lane.b32.xlu0 %v732, 109
    %v770 = vpop.permute.xlu0 %769
    %771 = vrot.lane.b32.xlu0 %v728, 109
    %v772 = vpop.permute.xlu0 %771
    %v773 = vsel %vm88, %v768, %v770
    %v774 = vsel %vm88, %v770, %v772
    %777 = vrot.lane.b32.xlu0 %v735, 108
    %v778 = vpop.permute.xlu0 %777
    %779 = vrot.lane.b32.xlu0 %v727, 108
    %v780 = vpop.permute.xlu0 %779
    %781 = vrot.lane.b32.xlu0 %v736, 108
    %v782 = vpop.permute.xlu0 %781
    %v783 = vsel %vm99, %v778, %v780
    %v784 = vsel %vm99, %v780, %v782
    %787 = vrot.lane.b32.xlu0 %v727, 92
    %v788 = vpop.permute.xlu0 %787
    %789 = vrot.lane.b32.xlu0 %v732, 92
    %v790 = vpop.permute.xlu0 %789
    %791 = vrot.lane.b32.xlu0 %v728, 92
    %v792 = vpop.permute.xlu0 %791
    %v793 = vsel %vm110, %v788, %v790
    %v794 = vsel %vm110, %v790, %v792
    %797 = vrot.lane.b32.xlu0 %v735, 91
    %v798 = vpop.permute.xlu0 %797
    %799 = vrot.lane.b32.xlu0 %v727, 91
    %v800 = vpop.permute.xlu0 %799
    %801 = vrot.lane.b32.xlu0 %v736, 91
    %v802 = vpop.permute.xlu0 %801
    %v803 = vsel %vm121, %v798, %v800
    %v804 = vsel %vm121, %v800, %v802
    %807 = vrot.lane.b32.xlu0 %v727, 90
    %v808 = vpop.permute.xlu0 %807
    %809 = vrot.lane.b32.xlu0 %v732, 90
    %v810 = vpop.permute.xlu0 %809
    %811 = vrot.lane.b32.xlu0 %v728, 90
    %v812 = vpop.permute.xlu0 %811
    %v813 = vsel %vm132, %v808, %v810
    %v814 = vsel %vm132, %v810, %v812
    %v815 = vsel %vm135, %v727, %v743
    %v816 = vsel %vm135, %v732, %v744
    %v817 = vsel %vm135, %v753, %v763
    %v818 = vsel %vm135, %v754, %v764
    %v819 = vsel %vm135, %v773, %v783
    %v820 = vsel %vm135, %v774, %v784
    %v821 = vsel %vm135, %v793, %v803
    %v822 = vsel %vm135, %v794, %v804
    %v824 = vsel %vm144, %v730, 0
    %v826 = vsel %vm135, %v813, 0
    %v828 = vsel %vm135, %v814, 0
    %v830 = vand.u32 %v816, 4294901760
    %831 = vmatprep.subr.mxu0 %v830
    %v832 = vand.u32 %v815, 4294901760
    %833 = vmatpush1.msra.mxu0 %v832
    %v834 = vand.u32 %v818, 4294901760
    %835 = vmatprep.subr.mxu0 %v834
    %v836 = vand.u32 %v817, 4294901760
    %837 = vmatpush1.msra.mxu0 %v836
    %v838 = vand.u32 %v820, 4294901760
    %839 = vmatprep.subr.mxu0 %v838
    %v840 = vand.u32 %v819, 4294901760
    %841 = vmatpush1.msra.mxu0 %v840
    %v842 = vand.u32 %v822, 4294901760
    %843 = vmatprep.subr.mxu0 %v842
    %v844 = vand.u32 %v821, 4294901760
    %845 = vmatpush1.msra.mxu0 %v844
    %v846 = vand.u32 %v828, 4294901760
    %847 = vmatprep.subr.mxu0 %v846
    %v848 = vand.u32 %v826, 4294901760
    %849 = vmatpush1.msra.mxu0 %v848
    %850 = vmatprep.subr.mxu0 0.0
    %851 = vmatpush1.msra.mxu0 0.0
    %852 = vmatprep.subr.mxu0 0.0
    %853 = vmatpush1.msra.mxu0 0.0
    %854 = vmatprep.subr.mxu0 0.0
    %855 = vmatpush1.msra.mxu0 0.0
    %856 = vmatprep.subr.mxu0 0.0
    %857 = vmatpush1.msra.mxu0 0.0
    %858 = vmatprep.subr.mxu0 0.0
    %859 = vmatpush1.msra.mxu0 0.0
    %860 = vmatprep.subr.mxu0 0.0
    %861 = vmatpush1.msra.mxu0 0.0
    %862 = vmatprep.subr.mxu0 0.0
    %863 = vmatpush1.msra.mxu0 0.0
    %864 = vmatprep.subr.mxu0 0.0
    %865 = vmatpush1.msra.mxu0 0.0
    %866 = vmatprep.subr.mxu0 0.0
    %867 = vmatpush1.msra.mxu0 0.0
    %868 = vmatprep.subr.mxu0 0.0
    %869 = vmatpush1.msra.mxu0 0.0
    %870 = vmatprep.subr.mxu0 0.0
    %871 = vmatpush1.msra.mxu0 0.0
    %872 = vmatprep.subr.mxu0 0.0
    %873 = vmatpush1.msra.mxu0 0.0
    %874 = vmatprep.subr.mxu0 0.0
    %875 = vmatpush1.msra.mxu0 0.0
    %876 = vmatprep.subr.mxu0 0.0
    %877 = vmatpush1.msra.mxu0 0.0
    %878 = vmatprep.subr.mxu0 0.0
    %879 = vmatpush1.msra.mxu0 0.0
    %880 = vmatprep.subr.mxu0 0.0
    %881 = vmatpush1.msra.mxu0 0.0
    %882 = vmatprep.subr.mxu0 0.0
    %883 = vmatpush1.msra.mxu0 0.0
    %884 = vmatprep.subr.mxu0 0.0
    %885 = vmatpush1.msra.mxu0 0.0
    %886 = vmatprep.subr.mxu0 0.0
    %887 = vmatpush1.msra.mxu0 0.0
    %888 = vmatprep.subr.mxu0 0.0
    %889 = vmatpush1.msra.mxu0 0.0
    %890 = vmatprep.subr.mxu0 0.0
    %891 = vmatpush1.msra.mxu0 0.0
    %892 = vmatprep.subr.mxu0 0.0
    %893 = vmatpush1.msra.mxu0 0.0
    %894 = vmatprep.subr.mxu0 0.0
    %895 = vmatpush1.msra.mxu0 0.0
    %896 = vmatprep.subr.mxu0 0.0
    %897 = vmatpush1.msra.mxu0 0.0
    %898 = vmatprep.subr.mxu0 0.0
    %899 = vmatpush1.msra.mxu0 0.0
    %900 = vmatprep.subr.mxu0 0.0
    %901 = vmatpush1.msra.mxu0 0.0
    %902 = vmatprep.subr.mxu0 0.0
    %903 = vmatpush1.msra.mxu0 0.0
    %904 = vmatprep.mubr.f32.mxu0 0.0
    %v905 = vand.u32 %v824, 4294901760
    %v906 = vsub.f32 %v824, %v905
    %v907 = vand.u32 %v906, 4294901760
    %v908 = vsub.f32 %v906, %v907
    %v909 = vand.u32 %v908, 4294901760
    %910 = vmatmul.mubr.f32.gmra.mrb[0].mxu0 %v909
    %v911 = vpop.f32.mrb[0].mxu0
    %v912 = vadd.f32 0.0, %v911
    %v913 = vpop.f32.mrb[0].mxu0
    %v914 = vadd.f32 0.0, %v913
    %915 = vdwg.mxu0
    %v916 = vand.u32 %v816, 4294901760
    %v917 = vsub.f32 %v816, %v916
    %v918 = vand.u32 %v917, 4294901760
    %v919 = vsub.f32 %v917, %v918
    %v920 = vand.u32 %v919, 4294901760
    %921 = vmatprep.subr.mxu0 %v920
    %v922 = vand.u32 %v815, 4294901760
    %v923 = vsub.f32 %v815, %v922
    %v924 = vand.u32 %v923, 4294901760
    %v925 = vsub.f32 %v923, %v924
    %v926 = vand.u32 %v925, 4294901760
    %927 = vmatpush1.msra.mxu0 %v926
    %v928 = vand.u32 %v818, 4294901760
    %v929 = vsub.f32 %v818, %v928
    %v930 = vand.u32 %v929, 4294901760
    %v931 = vsub.f32 %v929, %v930
    %v932 = vand.u32 %v931, 4294901760
    %933 = vmatprep.subr.mxu0 %v932
    %v934 = vand.u32 %v817, 4294901760
    %v935 = vsub.f32 %v817, %v934
    %v936 = vand.u32 %v935, 4294901760
    %v937 = vsub.f32 %v935, %v936
    %v938 = vand.u32 %v937, 4294901760
    %939 = vmatpush1.msra.mxu0 %v938
    %v940 = vand.u32 %v820, 4294901760
    %v941 = vsub.f32 %v820, %v940
    %v942 = vand.u32 %v941, 4294901760
    %v943 = vsub.f32 %v941, %v942
    %v944 = vand.u32 %v943, 4294901760
    %945 = vmatprep.subr.mxu0 %v944
    %v946 = vand.u32 %v819, 4294901760
    %v947 = vsub.f32 %v819, %v946
    %v948 = vand.u32 %v947, 4294901760
    %v949 = vsub.f32 %v947, %v948
    %v950 = vand.u32 %v949, 4294901760
    %951 = vmatpush1.msra.mxu0 %v950
    %v952 = vand.u32 %v822, 4294901760
    %v953 = vsub.f32 %v822, %v952
    %v954 = vand.u32 %v953, 4294901760
    %v955 = vsub.f32 %v953, %v954
    %v956 = vand.u32 %v955, 4294901760
    %957 = vmatprep.subr.mxu0 %v956
    %v958 = vand.u32 %v821, 4294901760
    %v959 = vsub.f32 %v821, %v958
    %v960 = vand.u32 %v959, 4294901760
    %v961 = vsub.f32 %v959, %v960
    %v962 = vand.u32 %v961, 4294901760
    %963 = vmatpush1.msra.mxu0 %v962
    %v964 = vand.u32 %v828, 4294901760
    %v965 = vsub.f32 %v828, %v964
    %v966 = vand.u32 %v965, 4294901760
    %v967 = vsub.f32 %v965, %v966
    %v968 = vand.u32 %v967, 4294901760
    %969 = vmatprep.subr.mxu0 %v968
    %v970 = vand.u32 %v826, 4294901760
    %v971 = vsub.f32 %v826, %v970
    %v972 = vand.u32 %v971, 4294901760
    %v973 = vsub.f32 %v971, %v972
    %v974 = vand.u32 %v973, 4294901760
    %975 = vmatpush1.msra.mxu0 %v974
    %976 = vmatprep.subr.mxu0 0.0
    %977 = vmatpush1.msra.mxu0 0.0
    %978 = vmatprep.subr.mxu0 0.0
    %979 = vmatpush1.msra.mxu0 0.0
    %980 = vmatprep.subr.mxu0 0.0
    %981 = vmatpush1.msra.mxu0 0.0
    %982 = vmatprep.subr.mxu0 0.0
    %983 = vmatpush1.msra.mxu0 0.0
    %984 = vmatprep.subr.mxu0 0.0
    %985 = vmatpush1.msra.mxu0 0.0
    %986 = vmatprep.subr.mxu0 0.0
    %987 = vmatpush1.msra.mxu0 0.0
    %988 = vmatprep.subr.mxu0 0.0
    %989 = vmatpush1.msra.mxu0 0.0
    %990 = vmatprep.subr.mxu0 0.0
    %991 = vmatpush1.msra.mxu0 0.0
    %992 = vmatprep.subr.mxu0 0.0
    %993 = vmatpush1.msra.mxu0 0.0
    %994 = vmatprep.subr.mxu0 0.0
    %995 = vmatpush1.msra.mxu0 0.0
    %996 = vmatprep.subr.mxu0 0.0
    %997 = vmatpush1.msra.mxu0 0.0
    %998 = vmatprep.subr.mxu0 0.0
    %999 = vmatpush1.msra.mxu0 0.0
    %1000 = vmatprep.subr.mxu0 0.0
    %1001 = vmatpush1.msra.mxu0 0.0
    %1002 = vmatprep.subr.mxu0 0.0
    %1003 = vmatpush1.msra.mxu0 0.0
    %1004 = vmatprep.subr.mxu0 0.0
    %1005 = vmatpush1.msra.mxu0 0.0
    %1006 = vmatprep.subr.mxu0 0.0
    %1007 = vmatpush1.msra.mxu0 0.0
    %1008 = vmatprep.subr.mxu0 0.0
    %1009 = vmatpush1.msra.mxu0 0.0
    %1010 = vmatprep.subr.mxu0 0.0
    %1011 = vmatpush1.msra.mxu0 0.0
    %1012 = vmatprep.subr.mxu0 0.0
    %1013 = vmatpush1.msra.mxu0 0.0
    %1014 = vmatprep.subr.mxu0 0.0
    %1015 = vmatpush1.msra.mxu0 0.0
    %1016 = vmatprep.subr.mxu0 0.0
    %1017 = vmatpush1.msra.mxu0 0.0
    %1018 = vmatprep.subr.mxu0 0.0
    %1019 = vmatpush1.msra.mxu0 0.0
    %1020 = vmatprep.subr.mxu0 0.0
    %1021 = vmatpush1.msra.mxu0 0.0
    %1022 = vmatprep.subr.mxu0 0.0
    %1023 = vmatpush1.msra.mxu0 0.0
    %1024 = vmatprep.subr.mxu0 0.0
    %1025 = vmatpush1.msra.mxu0 0.0
    %1026 = vmatprep.subr.mxu0 0.0
    %1027 = vmatpush1.msra.mxu0 0.0
    %1028 = vmatprep.subr.mxu0 0.0
    %1029 = vmatpush1.msra.mxu0 0.0
    %1030 = vmatprep.mubr.f32.mxu0 0.0
    %v1031 = vand.u32 %v824, 4294901760
    %1032 = vmatmul.mubr.f32.gmra.mrb[0].mxu0 %v1031
    %v1033 = vpop.f32.mrb[0].mxu0
    %v1034 = vadd.f32 %v912, %v1033
    %v1035 = vpop.f32.mrb[0].mxu0
    %v1036 = vadd.f32 %v914, %v1035
    %1037 = vdwg.mxu0
    %v1038 = vand.u32 %v816, 4294901760
    %v1039 = vsub.f32 %v816, %v1038
    %1040 = vmatprep.subr.mxu0 %v1039
    %v1041 = vand.u32 %v815, 4294901760
    %v1042 = vsub.f32 %v815, %v1041
    %1043 = vmatpush1.msra.mxu0 %v1042
    %v1044 = vand.u32 %v818, 4294901760
    %v1045 = vsub.f32 %v818, %v1044
    %1046 = vmatprep.subr.mxu0 %v1045
    %v1047 = vand.u32 %v817, 4294901760
    %v1048 = vsub.f32 %v817, %v1047
    %1049 = vmatpush1.msra.mxu0 %v1048
    %v1050 = vand.u32 %v820, 4294901760
    %v1051 = vsub.f32 %v820, %v1050
    %1052 = vmatprep.subr.mxu0 %v1051
    %v1053 = vand.u32 %v819, 4294901760
    %v1054 = vsub.f32 %v819, %v1053
    %1055 = vmatpush1.msra.mxu0 %v1054
    %v1056 = vand.u32 %v822, 4294901760
    %v1057 = vsub.f32 %v822, %v1056
    %1058 = vmatprep.subr.mxu0 %v1057
    %v1059 = vand.u32 %v821, 4294901760
    %v1060 = vsub.f32 %v821, %v1059
    %1061 = vmatpush1.msra.mxu0 %v1060
    %v1062 = vand.u32 %v828, 4294901760
    %v1063 = vsub.f32 %v828, %v1062
    %1064 = vmatprep.subr.mxu0 %v1063
    %v1065 = vand.u32 %v826, 4294901760
    %v1066 = vsub.f32 %v826, %v1065
    %1067 = vmatpush1.msra.mxu0 %v1066
    %1068 = vmatprep.subr.mxu0 0.0
    %1069 = vmatpush1.msra.mxu0 0.0
    %1070 = vmatprep.subr.mxu0 0.0
    %1071 = vmatpush1.msra.mxu0 0.0
    %1072 = vmatprep.subr.mxu0 0.0
    %1073 = vmatpush1.msra.mxu0 0.0
    %1074 = vmatprep.subr.mxu0 0.0
    %1075 = vmatpush1.msra.mxu0 0.0
    %1076 = vmatprep.subr.mxu0 0.0
    %1077 = vmatpush1.msra.mxu0 0.0
    %1078 = vmatprep.subr.mxu0 0.0
    %1079 = vmatpush1.msra.mxu0 0.0
    %1080 = vmatprep.subr.mxu0 0.0
    %1081 = vmatpush1.msra.mxu0 0.0
    %1082 = vmatprep.subr.mxu0 0.0
    %1083 = vmatpush1.msra.mxu0 0.0
    %1084 = vmatprep.subr.mxu0 0.0
    %1085 = vmatpush1.msra.mxu0 0.0
    %1086 = vmatprep.subr.mxu0 0.0
    %1087 = vmatpush1.msra.mxu0 0.0
    %1088 = vmatprep.subr.mxu0 0.0
    %1089 = vmatpush1.msra.mxu0 0.0
    %1090 = vmatprep.subr.mxu0 0.0
    %1091 = vmatpush1.msra.mxu0 0.0
    %1092 = vmatprep.subr.mxu0 0.0
    %1093 = vmatpush1.msra.mxu0 0.0
    %1094 = vmatprep.subr.mxu0 0.0
    %1095 = vmatpush1.msra.mxu0 0.0
    %1096 = vmatprep.subr.mxu0 0.0
    %1097 = vmatpush1.msra.mxu0 0.0
    %1098 = vmatprep.subr.mxu0 0.0
    %1099 = vmatpush1.msra.mxu0 0.0
    %1100 = vmatprep.subr.mxu0 0.0
    %1101 = vmatpush1.msra.mxu0 0.0
    %1102 = vmatprep.subr.mxu0 0.0
    %1103 = vmatpush1.msra.mxu0 0.0
    %1104 = vmatprep.subr.mxu0 0.0
    %1105 = vmatpush1.msra.mxu0 0.0
    %1106 = vmatprep.subr.mxu0 0.0
    %1107 = vmatpush1.msra.mxu0 0.0
    %1108 = vmatprep.subr.mxu0 0.0
    %1109 = vmatpush1.msra.mxu0 0.0
    %1110 = vmatprep.subr.mxu0 0.0
    %1111 = vmatpush1.msra.mxu0 0.0
    %1112 = vmatprep.subr.mxu0 0.0
    %1113 = vmatpush1.msra.mxu0 0.0
    %1114 = vmatprep.subr.mxu0 0.0
    %1115 = vmatpush1.msra.mxu0 0.0
    %1116 = vmatprep.subr.mxu0 0.0
    %1117 = vmatpush1.msra.mxu0 0.0
    %1118 = vmatprep.subr.mxu0 0.0
    %1119 = vmatpush1.msra.mxu0 0.0
    %1120 = vmatprep.subr.mxu0 0.0
    %1121 = vmatpush1.msra.mxu0 0.0
    %1122 = vmatprep.mubr.f32.mxu0 0.0
    %v1123 = vand.u32 %v824, 4294901760
    %v1124 = vsub.f32 %v824, %v1123
    %1125 = vmatmul.mubr.f32.gmra.mrb[0].mxu0 %v1124
    %v1126 = vpop.f32.mrb[0].mxu0
    %v1127 = vadd.f32 %v1034, %v1126
    %v1128 = vpop.f32.mrb[0].mxu0
    %v1129 = vadd.f32 %v1036, %v1128
    %1130 = vdwg.mxu0
    %v1131 = vand.u32 %v816, 4294901760
    %1132 = vmatprep.subr.mxu0 %v1131
    %v1133 = vand.u32 %v815, 4294901760
    %1134 = vmatpush1.msra.mxu0 %v1133
    %v1135 = vand.u32 %v818, 4294901760
    %1136 = vmatprep.subr.mxu0 %v1135
    %v1137 = vand.u32 %v817, 4294901760
    %1138 = vmatpush1.msra.mxu0 %v1137
    %v1139 = vand.u32 %v820, 4294901760
    %1140 = vmatprep.subr.mxu0 %v1139
    %v1141 = vand.u32 %v819, 4294901760
    %1142 = vmatpush1.msra.mxu0 %v1141
    %v1143 = vand.u32 %v822, 4294901760
    %1144 = vmatprep.subr.mxu0 %v1143
    %v1145 = vand.u32 %v821, 4294901760
    %1146 = vmatpush1.msra.mxu0 %v1145
    %v1147 = vand.u32 %v828, 4294901760
    %1148 = vmatprep.subr.mxu0 %v1147
    %v1149 = vand.u32 %v826, 4294901760
    %1150 = vmatpush1.msra.mxu0 %v1149
    %1151 = vmatprep.subr.mxu0 0.0
    %1152 = vmatpush1.msra.mxu0 0.0
    %1153 = vmatprep.subr.mxu0 0.0
    %1154 = vmatpush1.msra.mxu0 0.0
    %1155 = vmatprep.subr.mxu0 0.0
    %1156 = vmatpush1.msra.mxu0 0.0
    %1157 = vmatprep.subr.mxu0 0.0
    %1158 = vmatpush1.msra.mxu0 0.0
    %1159 = vmatprep.subr.mxu0 0.0
    %1160 = vmatpush1.msra.mxu0 0.0
    %1161 = vmatprep.subr.mxu0 0.0
    %1162 = vmatpush1.msra.mxu0 0.0
    %1163 = vmatprep.subr.mxu0 0.0
    %1164 = vmatpush1.msra.mxu0 0.0
    %1165 = vmatprep.subr.mxu0 0.0
    %1166 = vmatpush1.msra.mxu0 0.0
    %1167 = vmatprep.subr.mxu0 0.0
    %1168 = vmatpush1.msra.mxu0 0.0
    %1169 = vmatprep.subr.mxu0 0.0
    %1170 = vmatpush1.msra.mxu0 0.0
    %1171 = vmatprep.subr.mxu0 0.0
    %1172 = vmatpush1.msra.mxu0 0.0
    %1173 = vmatprep.subr.mxu0 0.0
    %1174 = vmatpush1.msra.mxu0 0.0
    %1175 = vmatprep.subr.mxu0 0.0
    %1176 = vmatpush1.msra.mxu0 0.0
    %1177 = vmatprep.subr.mxu0 0.0
    %1178 = vmatpush1.msra.mxu0 0.0
    %1179 = vmatprep.subr.mxu0 0.0
    %1180 = vmatpush1.msra.mxu0 0.0
    %1181 = vmatprep.subr.mxu0 0.0
    %1182 = vmatpush1.msra.mxu0 0.0
    %1183 = vmatprep.subr.mxu0 0.0
    %1184 = vmatpush1.msra.mxu0 0.0
    %1185 = vmatprep.subr.mxu0 0.0
    %1186 = vmatpush1.msra.mxu0 0.0
    %1187 = vmatprep.subr.mxu0 0.0
    %1188 = vmatpush1.msra.mxu0 0.0
    %1189 = vmatprep.subr.mxu0 0.0
    %1190 = vmatpush1.msra.mxu0 0.0
    %1191 = vmatprep.subr.mxu0 0.0
    %1192 = vmatpush1.msra.mxu0 0.0
    %1193 = vmatprep.subr.mxu0 0.0
    %1194 = vmatpush1.msra.mxu0 0.0
    %1195 = vmatprep.subr.mxu0 0.0
    %1196 = vmatpush1.msra.mxu0 0.0
    %1197 = vmatprep.subr.mxu0 0.0
    %1198 = vmatpush1.msra.mxu0 0.0
    %1199 = vmatprep.subr.mxu0 0.0
    %1200 = vmatpush1.msra.mxu0 0.0
    %1201 = vmatprep.subr.mxu0 0.0
    %1202 = vmatpush1.msra.mxu0 0.0
    %1203 = vmatprep.subr.mxu0 0.0
    %1204 = vmatpush1.msra.mxu0 0.0
    %1205 = vmatprep.mubr.f32.mxu0 0.0
    %v1206 = vand.u32 %v824, 4294901760
    %v1207 = vsub.f32 %v824, %v1206
    %v1208 = vand.u32 %v1207, 4294901760
    %1209 = vmatmul.mubr.f32.gmra.mrb[0].mxu0 %v1208
    %v1210 = vpop.f32.mrb[0].mxu0
    %v1211 = vadd.f32 %v1127, %v1210
    %v1212 = vpop.f32.mrb[0].mxu0
    %v1213 = vadd.f32 %v1129, %v1212
    %1214 = vdwg.mxu0
    %v1215 = vand.u32 %v816, 4294901760
    %v1216 = vsub.f32 %v816, %v1215
    %v1217 = vand.u32 %v1216, 4294901760
    %1218 = vmatprep.subr.mxu0 %v1217
    %v1219 = vand.u32 %v815, 4294901760
    %v1220 = vsub.f32 %v815, %v1219
    %v1221 = vand.u32 %v1220, 4294901760
    %1222 = vmatpush1.msra.mxu0 %v1221
    %v1223 = vand.u32 %v818, 4294901760
    %v1224 = vsub.f32 %v818, %v1223
    %v1225 = vand.u32 %v1224, 4294901760
    %1226 = vmatprep.subr.mxu0 %v1225
    %v1227 = vand.u32 %v817, 4294901760
    %v1228 = vsub.f32 %v817, %v1227
    %v1229 = vand.u32 %v1228, 4294901760
    %1230 = vmatpush1.msra.mxu0 %v1229
    %v1231 = vand.u32 %v820, 4294901760
    %v1232 = vsub.f32 %v820, %v1231
    %v1233 = vand.u32 %v1232, 4294901760
    %1234 = vmatprep.subr.mxu0 %v1233
    %v1235 = vand.u32 %v819, 4294901760
    %v1236 = vsub.f32 %v819, %v1235
    %v1237 = vand.u32 %v1236, 4294901760
    %1238 = vmatpush1.msra.mxu0 %v1237
    %v1239 = vand.u32 %v822, 4294901760
    %v1240 = vsub.f32 %v822, %v1239
    %v1241 = vand.u32 %v1240, 4294901760
    %1242 = vmatprep.subr.mxu0 %v1241
    %v1243 = vand.u32 %v821, 4294901760
    %v1244 = vsub.f32 %v821, %v1243
    %v1245 = vand.u32 %v1244, 4294901760
    %1246 = vmatpush1.msra.mxu0 %v1245
    %v1247 = vand.u32 %v828, 4294901760
    %v1248 = vsub.f32 %v828, %v1247
    %v1249 = vand.u32 %v1248, 4294901760
    %1250 = vmatprep.subr.mxu0 %v1249
    %v1251 = vand.u32 %v826, 4294901760
    %v1252 = vsub.f32 %v826, %v1251
    %v1253 = vand.u32 %v1252, 4294901760
    %1254 = vmatpush1.msra.mxu0 %v1253
    %1255 = vmatprep.subr.mxu0 0.0
    %1256 = vmatpush1.msra.mxu0 0.0
    %1257 = vmatprep.subr.mxu0 0.0
    %1258 = vmatpush1.msra.mxu0 0.0
    %1259 = vmatprep.subr.mxu0 0.0
    %1260 = vmatpush1.msra.mxu0 0.0
    %1261 = vmatprep.subr.mxu0 0.0
    %1262 = vmatpush1.msra.mxu0 0.0
    %1263 = vmatprep.subr.mxu0 0.0
    %1264 = vmatpush1.msra.mxu0 0.0
    %1265 = vmatprep.subr.mxu0 0.0
    %1266 = vmatpush1.msra.mxu0 0.0
    %1267 = vmatprep.subr.mxu0 0.0
    %1268 = vmatpush1.msra.mxu0 0.0
    %1269 = vmatprep.subr.mxu0 0.0
    %1270 = vmatpush1.msra.mxu0 0.0
    %1271 = vmatprep.subr.mxu0 0.0
    %1272 = vmatpush1.msra.mxu0 0.0
    %1273 = vmatprep.subr.mxu0 0.0
    %1274 = vmatpush1.msra.mxu0 0.0
    %1275 = vmatprep.subr.mxu0 0.0
    %1276 = vmatpush1.msra.mxu0 0.0
    %1277 = vmatprep.subr.mxu0 0.0
    %1278 = vmatpush1.msra.mxu0 0.0
    %1279 = vmatprep.subr.mxu0 0.0
    %1280 = vmatpush1.msra.mxu0 0.0
    %1281 = vmatprep.subr.mxu0 0.0
    %1282 = vmatpush1.msra.mxu0 0.0
    %1283 = vmatprep.subr.mxu0 0.0
    %1284 = vmatpush1.msra.mxu0 0.0
    %1285 = vmatprep.subr.mxu0 0.0
    %1286 = vmatpush1.msra.mxu0 0.0
    %1287 = vmatprep.subr.mxu0 0.0
    %1288 = vmatpush1.msra.mxu0 0.0
    %1289 = vmatprep.subr.mxu0 0.0
    %1290 = vmatpush1.msra.mxu0 0.0
    %1291 = vmatprep.subr.mxu0 0.0
    %1292 = vmatpush1.msra.mxu0 0.0
    %1293 = vmatprep.subr.mxu0 0.0
    %1294 = vmatpush1.msra.mxu0 0.0
    %1295 = vmatprep.subr.mxu0 0.0
    %1296 = vmatpush1.msra.mxu0 0.0
    %1297 = vmatprep.subr.mxu0 0.0
    %1298 = vmatpush1.msra.mxu0 0.0
    %1299 = vmatprep.subr.mxu0 0.0
    %1300 = vmatpush1.msra.mxu0 0.0
    %1301 = vmatprep.subr.mxu0 0.0
    %1302 = vmatpush1.msra.mxu0 0.0
    %1303 = vmatprep.subr.mxu0 0.0
    %1304 = vmatpush1.msra.mxu0 0.0
    %1305 = vmatprep.subr.mxu0 0.0
    %1306 = vmatpush1.msra.mxu0 0.0
    %1307 = vmatprep.subr.mxu0 0.0
    %1308 = vmatpush1.msra.mxu0 0.0
    %1309 = vmatprep.mubr.f32.mxu0 0.0
    %v1310 = vand.u32 %v824, 4294901760
    %1311 = vmatmul.mubr.f32.gmra.mrb[0].mxu0 %v1310
    %v1312 = vpop.f32.mrb[0].mxu0
    %v1313 = vadd.f32 %v1211, %v1312
    %v1314 = vpop.f32.mrb[0].mxu0
    %v1315 = vadd.f32 %v1213, %v1314
    %1316 = vdwg.mxu0
    %v1317 = vand.u32 %v816, 4294901760
    %1318 = vmatprep.subr.mxu0 %v1317
    %v1319 = vand.u32 %v815, 4294901760
    %1320 = vmatpush1.msra.mxu0 %v1319
    %v1321 = vand.u32 %v818, 4294901760
    %1322 = vmatprep.subr.mxu0 %v1321
    %v1323 = vand.u32 %v817, 4294901760
    %1324 = vmatpush1.msra.mxu0 %v1323
    %v1325 = vand.u32 %v820, 4294901760
    %1326 = vmatprep.subr.mxu0 %v1325
    %v1327 = vand.u32 %v819, 4294901760
    %1328 = vmatpush1.msra.mxu0 %v1327
    %v1329 = vand.u32 %v822, 4294901760
    %1330 = vmatprep.subr.mxu0 %v1329
    %v1331 = vand.u32 %v821, 4294901760
    %1332 = vmatpush1.msra.mxu0 %v1331
    %v1333 = vand.u32 %v828, 4294901760
    %1334 = vmatprep.subr.mxu0 %v1333
    %v1335 = vand.u32 %v826, 4294901760
    %1336 = vmatpush1.msra.mxu0 %v1335
    %1337 = vmatprep.subr.mxu0 0.0
    %1338 = vmatpush1.msra.mxu0 0.0
    %1339 = vmatprep.subr.mxu0 0.0
    %1340 = vmatpush1.msra.mxu0 0.0
    %1341 = vmatprep.subr.mxu0 0.0
    %1342 = vmatpush1.msra.mxu0 0.0
    %1343 = vmatprep.subr.mxu0 0.0
    %1344 = vmatpush1.msra.mxu0 0.0
    %1345 = vmatprep.subr.mxu0 0.0
    %1346 = vmatpush1.msra.mxu0 0.0
    %1347 = vmatprep.subr.mxu0 0.0
    %1348 = vmatpush1.msra.mxu0 0.0
    %1349 = vmatprep.subr.mxu0 0.0
    %1350 = vmatpush1.msra.mxu0 0.0
    %1351 = vmatprep.subr.mxu0 0.0
    %1352 = vmatpush1.msra.mxu0 0.0
    %1353 = vmatprep.subr.mxu0 0.0
    %1354 = vmatpush1.msra.mxu0 0.0
    %1355 = vmatprep.subr.mxu0 0.0
    %1356 = vmatpush1.msra.mxu0 0.0
    %1357 = vmatprep.subr.mxu0 0.0
    %1358 = vmatpush1.msra.mxu0 0.0
    %1359 = vmatprep.subr.mxu0 0.0
    %1360 = vmatpush1.msra.mxu0 0.0
    %1361 = vmatprep.subr.mxu0 0.0
    %1362 = vmatpush1.msra.mxu0 0.0
    %1363 = vmatprep.subr.mxu0 0.0
    %1364 = vmatpush1.msra.mxu0 0.0
    %1365 = vmatprep.subr.mxu0 0.0
    %1366 = vmatpush1.msra.mxu0 0.0
    %1367 = vmatprep.subr.mxu0 0.0
    %1368 = vmatpush1.msra.mxu0 0.0
    %1369 = vmatprep.subr.mxu0 0.0
    %1370 = vmatpush1.msra.mxu0 0.0
    %1371 = vmatprep.subr.mxu0 0.0
    %1372 = vmatpush1.msra.mxu0 0.0
    %1373 = vmatprep.subr.mxu0 0.0
    %1374 = vmatpush1.msra.mxu0 0.0
    %1375 = vmatprep.subr.mxu0 0.0
    %1376 = vmatpush1.msra.mxu0 0.0
    %1377 = vmatprep.subr.mxu0 0.0
    %1378 = vmatpush1.msra.mxu0 0.0
    %1379 = vmatprep.subr.mxu0 0.0
    %1380 = vmatpush1.msra.mxu0 0.0
    %1381 = vmatprep.subr.mxu0 0.0
    %1382 = vmatpush1.msra.mxu0 0.0
    %1383 = vmatprep.subr.mxu0 0.0
    %1384 = vmatpush1.msra.mxu0 0.0
    %1385 = vmatprep.subr.mxu0 0.0
    %1386 = vmatpush1.msra.mxu0 0.0
    %1387 = vmatprep.subr.mxu0 0.0
    %1388 = vmatpush1.msra.mxu0 0.0
    %1389 = vmatprep.subr.mxu0 0.0
    %1390 = vmatpush1.msra.mxu0 0.0
    %1391 = vmatprep.mubr.f32.mxu0 0.0
    %v1392 = vand.u32 %v824, 4294901760
    %1393 = vmatmul.mubr.f32.gmra.mrb[0].mxu0 %v1392
    %v1394 = vpop.f32.mrb[0].mxu0
    %v1395 = vadd.f32 %v1313, %v1394
    %v1396 = vpop.f32.mrb[0].mxu0
    %v1397 = vadd.f32 %v1315, %v1396
    %1398 = vdwg.mxu0
    %v1401 = vcombine.low %v1395, %v1397
    %s1403 = scalar_lea.vmem [#allocation7], 8
    %1404 = vst [vmem:[%s1403] sm:$0xff] %v1401
    // Predicated region
    $region18: #{tpu_custom_call.1} parent=1 // pred_check
      _
    $region19: #{tpu_custom_call.1} parent=1 // pred_check_branch
      %1406 = sbr.rel (0) target = $region21
    $region20: #{tpu_custom_call.1} parent=1 // pred_region
      %s1408 = ssub.s32 256, 256
      %1409 = vsyncadd [#allocation4], %s1408
      %s1410 = sshll.u32 [#allocation7], 4
      %s1411 = int_to_ptr.vmem [resolvable:$true] %s1410
      %1416 = dma.vmem_to_hbm [thread:$0]  %s1411, 256, %s2, [#allocation4], 128, 128, 8
    $region21: #{tpu_custom_call.1} parent=1 // pred_fallthru
      _
    // Predicated region
    $region22: #{tpu_custom_call.1} parent=1 // pred_check
      _
    $region23: #{tpu_custom_call.1} parent=1 // pred_check_branch
      %1418 = sbr.rel (0) target = $region25
    $region24: #{tpu_custom_call.1} parent=1 // pred_region
      %1419 = dma.done [#allocation4], 256
    $region25: #{tpu_custom_call.1} parent=1 // pred_fallthru
      _
    %1420 = vsyncpa [#allocation3], 1
    %1421 = vsyncpa [#allocation6], 1
    %1422 = vsyncpa [#allocation4], 1

</llo_original>
